<compile_context>
chip_gen: v6e
topology: v6e:2x2x1
jax: 0.10.0
libtpu: 0.0.40
codegen_flags: <defaults>
</compile_context>

<pallas_src>
import functools

import numpy as np
import jax
import jax.numpy as jnp
from jax import lax
from jax.experimental import pallas as pl
from jax.experimental.pallas import tpu as pltpu


def _vmem_capacity_bytes():
    try:
        return int(pltpu.get_tpu_info().vmem_capacity_bytes)
    except Exception:
        return 64 * 1024 * 1024  # conservative (v7x-sized) fallback


def _choose_blocking(c, row_bytes, target_bytes):
    """Pick channels-per-block `cb` and (possibly padded) channel count.

    Prefers divisors of c (no wrapper-side pad copy), multiples of 8 (full vreg
    sublane occupancy), as large as fits the byte target.
    """
    budget = max(target_bytes, min(c, 8) * row_bytes)
    divisors = [d for d in range(1, c + 1) if c % d == 0]
    mult8 = [d for d in divisors if d % 8 == 0 and d * row_bytes <= budget]
    if mult8:
        return max(mult8), c
    fitting = [d for d in divisors if d * row_bytes <= budget]
    if fitting and max(fitting) >= min(c, 8):
        return max(fitting), c
    # Pathological C (e.g. large prime): pad channels up to a multiple of 8 so
    # blocks still fill all 8 sublanes.  Zero-padded channels contribute exactly 0.
    c_pad = -(-c // 8) * 8
    cb = 8
    while c_pad % (cb * 2) == 0 and (cb * 2) * row_bytes <= budget:
        cb *= 2
    return cb, c_pad


def _tv_loss_kernel(*refs, res, groups, wsub, inv_h, inv_w, inv_d, hoisted):
    """One channel block -> one scalar partial sum (broadcast over 128 lanes).

    refs = (w_ref?, x_ref, o_ref):
      w_ref: (3, wsub, n) f32 resident weights (only when `hoisted`)
      x_ref: (1, cb, n) input block, lane-dense flattened cubes
      o_ref: (1, 1, 128) f32 partial-sum output block
    """
    if hoisted:
        w_ref, x_ref, o_ref = refs
    else:
        x_ref, o_ref = refs

    n = res * res * res
    x = x_ref[0].astype(jnp.float32)                      # (cb, n), lane-dense

    def axis_sq_sum(shift):
        # prev[k] = x[k - shift] (circular roll; wrapped positions get weight 0,
        # and rolls along axis 1 never mix rows/channels).
        d = x - pltpu.roll(x, shift, 1)
        sq = d * d                                        # (cb, n)
        if groups > 1:
            # Fold channels with sublane-aligned adds (vreg-boundary reshape,
            # pure VALU) *before* applying the channel-independent weights.
            sq = sq.reshape(groups, wsub, n).sum(axis=0)  # (wsub, n)
        return sq

    if hoisted:
        wh, ww, wd = w_ref[0], w_ref[1], w_ref[2]         # (wsub, n) each
    else:
        # Fallback for large res: generate weights on the reduced (wsub, n) slab
        # (still ~groups x cheaper than per-element masking of the full block).
        k = lax.broadcasted_iota(jnp.int32, (wsub, n), 1)
        wh = jnp.where((k // (res * res)) != 0, inv_h, 0.0)
        ww = jnp.where(((k // res) % res) != 0, inv_w, 0.0)
        wd = jnp.where((k % res) != 0, inv_d, 0.0)

    total = (axis_sq_sum(res * res) * wh
             + axis_sq_sum(res) * ww
             + axis_sq_sum(1) * wd)                       # (wsub, n)

    # One small cross-lane reduce per block; lane-dense (1, 1, 128) store.
    o_ref[...] = jnp.broadcast_to(jnp.sum(total), (1, 1, 128)).astype(jnp.float32)


def tv_loss(x, res, *, target_block_bytes=None):
    """Pallas equivalent of TVLoss(res)(x); x has shape (C, res**3)
    (or anything reshapeable to (C, res, res, res))."""
    c = x.shape[0]
    n = res * res * res
    xr = x.reshape(c, n)                                   # free reshape, no cast

    # PyTorch spec: count_* already include C, plus a trailing / c.
    count_h = c * (res - 1) * res * res
    count_w = c * res * (res - 1) * res
    count_d = c * res * res * (res - 1)
    inv_h = 1.0 / (count_h * c)
    inv_w = 1.0 / (count_w * c)
    inv_d = 1.0 / (count_d * c)

    itemsize = xr.dtype.itemsize
    row_bytes = n * itemsize

    vmem_cap = _vmem_capacity_bytes()
    usable = max(vmem_cap - (16 << 20), 24 << 20)          # leave headroom
    if target_block_bytes is None:
        target_block_bytes = int(min(8 << 20, max(usable // 8, 1 << 20)))

    cb, c_pad = _choose_blocking(c, row_bytes, int(target_block_bytes))
    if c_pad != c:
        xr = jnp.pad(xr, ((0, c_pad - c), (0, 0)))         # rare path only
    num_blocks = c_pad // cb
    xr = xr.reshape(num_blocks, cb, n)

    if cb % 8 == 0 and cb > 8:
        groups, wsub = cb // 8, 8
    else:
        groups, wsub = 1, cb

    # Hoisted per-position weights (mask * 1/count), sublane-replicated, DMA'd once.
    w_bytes = 3 * wsub * n * 4
    hoisted = w_bytes <= (4 << 20)
    inputs = []
    in_specs = []
    if hoisted:
        k = np.arange(n)
        w_np = np.stack([
            np.where((k // (res * res)) != 0, inv_h, 0.0),
            np.where(((k // res) % res) != 0, inv_w, 0.0),
            np.where((k % res) != 0, inv_d, 0.0),
        ]).astype(np.float32)                               # (3, n)
        w_np = np.ascontiguousarray(
            np.broadcast_to(w_np[:, None, :], (3, wsub, n)))
        inputs.append(jnp.asarray(w_np))
        in_specs.append(pl.BlockSpec((3, wsub, n), lambda i: (0, 0, 0)))
    inputs.append(xr)
    in_specs.append(pl.BlockSpec((1, cb, n), lambda i: (i, 0, 0)))

    kernel = functools.partial(
        _tv_loss_kernel, res=res, groups=groups, wsub=wsub,
        inv_h=inv_h, inv_w=inv_w, inv_d=inv_d, hoisted=hoisted)

    block_bytes = cb * row_bytes
    f32_block = cb * n * 4
    est = 2 * block_bytes + 2 * (w_bytes if hoisted else 0) + 3 * f32_block + (2 << 20)
    vmem_limit = int(min(max(est, 32 << 20), usable))
    # TODO(synk): for res >= 128 a single f32 channel row is >= 8 MiB (and >= 64 MiB
    # at res=256, exceeding v7x VMEM); that regime needs intra-channel H-axis tiling
    # with a 1-row halo instead of whole-cube rows.
    # TODO(synk): optional bf16 roll/sub path on v6e/v7x (bf16-native VALUs) with the
    # f32 cast deferred to the square/accumulate.

    partials = pl.pallas_call(
        kernel,
        out_shape=jax.ShapeDtypeStruct((num_blocks, 1, 128), jnp.float32),
        grid_spec=pltpu.PrefetchScalarGridSpec(
            num_scalar_prefetch=0,
            grid=(num_blocks,),
            in_specs=in_specs,
            out_specs=pl.BlockSpec((1, 1, 128), lambda i: (i, 0, 0)),
        ),
        compiler_params=pltpu.CompilerParams(
            # Blocks are fully independent, so v7x's two TensorCores split the grid;
            # on v5e/v6e (1 TC) this behaves like the previous serial loop.
            dimension_semantics=("parallel",),
            vmem_limit_bytes=vmem_limit,
        ),
    )(*inputs)

    # Tiny final reduction over per-block partial sums.
    return jnp.sum(partials[:, 0, 0])


def tv_loss_ref(x, res):
    """Pure-JAX reference, mirrors the PyTorch forward exactly."""
    c = x.shape[0]
    xr = x.reshape(c, res, res, res).astype(jnp.float32)
    count_h = c * (res - 1) * res * res
    count_w = c * res * (res - 1) * res
    count_d = c * res * res * (res - 1)
    h_tv = jnp.sum((xr[:, 1:, :, :] - xr[:, :-1, :, :]) ** 2)
    w_tv = jnp.sum((xr[:, :, 1:, :] - xr[:, :, :-1, :]) ** 2)
    d_tv = jnp.sum((xr[:, :, :, 1:] - xr[:, :, :, :-1]) ** 2)
    return (h_tv / count_h + w_tv / count_w + d_tv / count_d) / c


if __name__ == "__main__":
    key = jax.random.PRNGKey(0)
    res = 8
    # The module reshapes its input to (c, res, res, res); feed it flattened.
    cases = [
        dict(c=4, kwargs={}),                                   # cb=4  (groups=1, wsub=4)
        dict(c=16, kwargs={}),                                  # cb=16 (groups=2, wsub=8)
        dict(c=32, kwargs={"target_block_bytes": 16 * 1024}),   # cb=8, 4 parallel blocks
    ]
    for i, case in enumerate(cases):
        key, sub = jax.random.split(key)
        x = jax.random.normal(sub, (case["c"], res * res * res), dtype=jnp.float32)
        out = jax.block_until_ready(tv_loss(x, res, **case["kwargs"]))
        ref = tv_loss_ref(x, res)
        assert jnp.allclose(out, ref, rtol=1e-4, atol=1e-6), (i, out, ref)
    print("KERNEL_OK")
</pallas_src>

<mosaic_0001>
module attributes {stable_mosaic.version = 11 : i64} {
  func.func @_tv_loss_kernel(%arg0: i32, %arg1: memref<3x4x512xf32, #tpu.memory_space<vmem>>, %arg2: memref<1x4x512xf32, #tpu.memory_space<vmem>>, %arg3: memref<1x1x128xf32, #tpu.memory_space<vmem>>) attributes {dimension_semantics = [#tpu.dimension_semantics<parallel>], iteration_bounds = array<i64: 1>, scalar_prefetch = 0 : i64, scratch_operands = 0 : i64, tpu.core_type = #tpu.core_type<tc>, window_params = [{pipeline_mode = #tpu.pipeline_mode<synchronous>, transform_indices = @transform_0, window_bounds = array<i64: 3, 4, 512>}, {transform_indices = @transform_1, window_bounds = array<i64: 1, 4, 512>}, {transform_indices = @transform_2, window_bounds = array<i64: 1, 1, 128>}]} {
    %c0 = arith.constant 0 : index
    %c0_0 = arith.constant 0 : index
    %c0_1 = arith.constant 0 : index
    %0 = vector.load %arg2[%c0, %c0_0, %c0_1] : memref<1x4x512xf32, #tpu.memory_space<vmem>>, vector<1x4x512xf32>
    %1 = vector.shape_cast %0 : vector<1x4x512xf32> to vector<4x512xf32>
    %c0_2 = arith.constant 0 : index
    %c0_3 = arith.constant 0 : index
    %c0_4 = arith.constant 0 : index
    %2 = vector.load %arg1[%c0_2, %c0_3, %c0_4] : memref<3x4x512xf32, #tpu.memory_space<vmem>>, vector<1x4x512xf32>
    %3 = vector.shape_cast %2 : vector<1x4x512xf32> to vector<4x512xf32>
    %c1 = arith.constant 1 : index
    %c0_5 = arith.constant 0 : index
    %c0_6 = arith.constant 0 : index
    %4 = vector.load %arg1[%c1, %c0_5, %c0_6] : memref<3x4x512xf32, #tpu.memory_space<vmem>>, vector<1x4x512xf32>
    %5 = vector.shape_cast %4 : vector<1x4x512xf32> to vector<4x512xf32>
    %c2 = arith.constant 2 : index
    %c0_7 = arith.constant 0 : index
    %c0_8 = arith.constant 0 : index
    %6 = vector.load %arg1[%c2, %c0_7, %c0_8] : memref<3x4x512xf32, #tpu.memory_space<vmem>>, vector<1x4x512xf32>
    %7 = vector.shape_cast %6 : vector<1x4x512xf32> to vector<4x512xf32>
    %c64_i32 = arith.constant 64 : i32
    %8 = tpu.dynamic_rotate %1 by %c64_i32 dim 1 : vector<4x512xf32>, i32 -> vector<4x512xf32>
    %9 = arith.subf %1, %8 : vector<4x512xf32>
    %10 = arith.mulf %9, %9 : vector<4x512xf32>
    %11 = arith.mulf %10, %3 : vector<4x512xf32>
    %c8_i32 = arith.constant 8 : i32
    %12 = tpu.dynamic_rotate %1 by %c8_i32 dim 1 : vector<4x512xf32>, i32 -> vector<4x512xf32>
    %13 = arith.subf %1, %12 : vector<4x512xf32>
    %14 = arith.mulf %13, %13 : vector<4x512xf32>
    %15 = arith.mulf %14, %5 : vector<4x512xf32>
    %16 = arith.addf %11, %15 : vector<4x512xf32>
    %c1_i32 = arith.constant 1 : i32
    %17 = tpu.dynamic_rotate %1 by %c1_i32 dim 1 : vector<4x512xf32>, i32 -> vector<4x512xf32>
    %18 = arith.subf %1, %17 : vector<4x512xf32>
    %19 = arith.mulf %18, %18 : vector<4x512xf32>
    %20 = arith.mulf %19, %7 : vector<4x512xf32>
    %21 = arith.addf %16, %20 : vector<4x512xf32>
    %22 = vector.shape_cast %21 : vector<4x512xf32> to vector<1x4x512xf32>
    %cst = arith.constant dense<0.000000e+00> : vector<1xf32>
    %23 = vector.multi_reduction <add>, %22, %cst [1, 2] : vector<1x4x512xf32> to vector<1xf32>
    %24 = vector.shape_cast %23 : vector<1xf32> to vector<1x1x1xf32>
    %25 = vector.extract %24[0, 0, 0] : f32 from vector<1x1x1xf32>
    %26 = vector.broadcast %25 : f32 to vector<1x1x128xf32>
    %c0_9 = arith.constant 0 : index
    %c0_10 = arith.constant 0 : index
    %c0_11 = arith.constant 0 : index
    %27 = vector.load %arg3[%c0_9, %c0_10, %c0_11] : memref<1x1x128xf32, #tpu.memory_space<vmem>>, vector<1x1x128xf32>
    tpu.vector_store %arg3[%c0_9, %c0_10, %c0_11], %26 {strides = array<i32>} : memref<1x1x128xf32, #tpu.memory_space<vmem>>, vector<1x1x128xf32>,
    return
  }
  func.func @transform_0(%arg0: i32) -> (i32, i32, i32) {
    %c0_i32 = arith.constant 0 : i32
    %c0_i32_0 = arith.constant 0 : i32
    %c0_i32_1 = arith.constant 0 : i32
    %c0_i32_2 = arith.constant 0 : i32
    return %c0_i32, %c0_i32_0, %c0_i32_1 : i32, i32, i32
  }
  func.func @transform_1(%arg0: i32) -> (i32, i32, i32) {
    %c0_i32 = arith.constant 0 : i32
    %c0_i32_0 = arith.constant 0 : i32
    %c0_i32_1 = arith.constant 0 : i32
    return %arg0, %c0_i32, %c0_i32_0 : i32, i32, i32
  }
  func.func @transform_2(%arg0: i32) -> (i32, i32, i32) {
    %c0_i32 = arith.constant 0 : i32
    %c0_i32_0 = arith.constant 0 : i32
    %c0_i32_1 = arith.constant 0 : i32
    return %arg0, %c0_i32, %c0_i32_0 : i32, i32, i32
  }
}

</mosaic_0001>

<llo_original>
// kernel: tpu_custom_call.1
$region0: #{tpu_custom_call.1}
  #allocation0 [shape = 'u32[]', space=smem, size = 0x4, offset = 0x4, fixed_abs, tag = 'smem constant byte address 0x4 - core index']
  #allocation1 [shape = 'u32[144,128]{1,0:T(1,128)}', space=vmem, size = 0x12000, scoped, tag = 'internal scratch']
  %s0 = inlined_call_operand.hbm [shape: f32[3,4,512], index: 0, kind: input, shape index: {}]
  %s1 = inlined_call_operand.hbm [shape: f32[1,4,512], index: 1, kind: input, shape index: {}]
  %s2 = inlined_call_operand.hbm [shape: f32[1,1,128], index: 2, kind: output, shape index: {}]
  %s3 = sld [smem:[#allocation0]]
  $region26: #{tpu_custom_call.1} parent=0
    _
  %s5 = ssub.s32 1, %s3
  %s6 = scalar_select 0, %s5, %s3
  $region1: #{tpu_custom_call.1} parent=0
    #allocation2 [shape = 'u8[24576]{0}', space=vmem, size = 0x6000, scoped, tag = 'input window, operand 0, single buffered']
    #allocation3 [shape = 's32[1]{0}', space=sflag, size = 0x4, scoped, tag = 'scoped memory for tpu_custom_call.1']
    #allocation4 [shape = 's32[1]{0}', space=sflag, size = 0x4, scoped, tag = 'scoped memory for tpu_custom_call.1']
    #allocation5 [shape = 'u8[8192]{0}', space=vmem, size = 0x2000, scoped, tag = 'input window, operand 1, single buffered']
    #allocation6 [shape = 's32[1]{0}', space=sflag, size = 0x4, scoped, tag = 'scoped memory for tpu_custom_call.1']
    #allocation7 [shape = 'u8[512]{0}', space=vmem, size = 0x400, scoped, tag = 'output window, operand 0, single buffered']
    %7 = vsyncpa [#allocation3], 0
    %8 = vsyncpa [#allocation6], 0
    %9 = vsyncpa [#allocation4], 0
    // Predicated region
    $region2: #{tpu_custom_call.1} parent=1 // pred_check
      _
    $region3: #{tpu_custom_call.1} parent=1 // pred_check_branch
      %11 = sbr.rel (0) target = $region5
    $region4: #{tpu_custom_call.1} parent=1 // pred_region
      %s13 = ssub.s32 768, 768
      %14 = vsyncadd [#allocation3], %s13
      %s15 = sshll.u32 [#allocation2], 4
      %s16 = int_to_ptr.vmem [resolvable:$true] %s15
      %21 = dma.hbm_to_vmem [thread:$0]  %s0, 768, %s16, [#allocation3], 256, 256, 16
    $region5: #{tpu_custom_call.1} parent=1 // pred_fallthru
      _
    // Predicated region
    $region6: #{tpu_custom_call.1} parent=1 // pred_check
      _
    $region7: #{tpu_custom_call.1} parent=1 // pred_check_branch
      %23 = sbr.rel (0) target = $region9
    $region8: #{tpu_custom_call.1} parent=1 // pred_region
      %s25 = ssub.s32 256, 256
      %26 = vsyncadd [#allocation6], %s25
      %s28 = sshll.u32 [#allocation5], 4
      %s29 = int_to_ptr.vmem [resolvable:$true] %s28
      %31 = dma.hbm_to_vmem [thread:$0]  %s1, 256, %s29, [#allocation6]
    $region9: #{tpu_custom_call.1} parent=1 // pred_fallthru
      _
    // Predicated region
    $region10: #{tpu_custom_call.1} parent=1 // pred_check
      _
    $region11: #{tpu_custom_call.1} parent=1 // pred_check_branch
      %33 = sbr.rel (0) target = $region13
    $region12: #{tpu_custom_call.1} parent=1 // pred_region
      %34 = dma.done [#allocation3], 768
    $region13: #{tpu_custom_call.1} parent=1 // pred_fallthru
      _
    // Predicated region
    $region14: #{tpu_custom_call.1} parent=1 // pred_check
      _
    $region15: #{tpu_custom_call.1} parent=1 // pred_check_branch
      %36 = sbr.rel (0) target = $region17
    $region16: #{tpu_custom_call.1} parent=1 // pred_region
      %37 = dma.done [#allocation6], 256
    $region17: #{tpu_custom_call.1} parent=1 // pred_fallthru
      _
    %v38 = vld [vmem:[#allocation5] sm:$0xff]
    %v39 = vld [vmem:[#allocation5 + $0x8] sm:$0xff]
    %v40 = vld [vmem:[#allocation2] sm:$0xff]
    %v41 = vld [vmem:[#allocation2 + $0x8] sm:$0xff]
    %s42 = scalar_lea.vmem [#allocation2], 16
    %v43 = vld [vmem:[%s42] sm:$0xff]
    %v44 = vld [vmem:[%s42 + $0x8] sm:$0xff]
    %s45 = scalar_lea.vmem [#allocation2], 32
    %v46 = vld [vmem:[%s45] sm:$0xff]
    %v47 = vld [vmem:[%s45 + $0x8] sm:$0xff]
    %v50 = vcombine.high %v38, %v38
    %v51 = vcombine.high %v39, %v39
    %54 = vrot.lane.b32.xlu0 %v38, 64
    %v55 = vpop.permute.xlu0 %54
    %56 = vrot.lane.b32.xlu0 %v50, 64
    %v57 = vpop.permute.xlu0 %56
    %58 = vrot.lane.b32.xlu0 %v39, 64
    %v59 = vpop.permute.xlu0 %58
    %60 = vrot.lane.b32.xlu0 %v51, 64
    %v61 = vpop.permute.xlu0 %60
    %v62 = vlaneseq
    %v63 = vand.u32 %v62, 127
    %vm64 = vcmp.lt.s32.totalorder %v63, 64
    %v65 = vsel %vm64, %v59, %v61
    %v66 = vsel %vm64, %v57, %v59
    %v67 = vsel %vm64, %v55, %v57
    %v68 = vsel %vm64, %v61, %v55
    %v73 = vcombine.low %v68, %v67
    %v74 = vcombine.low %v66, %v65
    %v77 = vsub.f32 %v38, %v73
    %v78 = vsub.f32 %v39, %v74
    %v79 = vmul.f32 %v77, %v77
    %v80 = vmul.f32 %v78, %v78
    %v81 = vmul.f32 %v79, %v40
    %v82 = vmul.f32 %v80, %v41
    %83 = vrot.lane.b32.xlu0 %v38, 8
    %v84 = vpop.permute.xlu0 %83
    %85 = vrot.lane.b32.xlu0 %v50, 8
    %v86 = vpop.permute.xlu0 %85
    %87 = vrot.lane.b32.xlu0 %v39, 8
    %v88 = vpop.permute.xlu0 %87
    %89 = vrot.lane.b32.xlu0 %v51, 8
    %v90 = vpop.permute.xlu0 %89
    %vm91 = vcmp.lt.s32.totalorder %v63, 8
    %v92 = vsel %vm91, %v88, %v90
    %v93 = vsel %vm91, %v86, %v88
    %v94 = vsel %vm91, %v84, %v86
    %v95 = vsel %vm91, %v90, %v84
    %v100 = vcombine.low %v95, %v94
    %v101 = vcombine.low %v93, %v92
    %v104 = vsub.f32 %v38, %v100
    %v105 = vsub.f32 %v39, %v101
    %v106 = vmul.f32 %v104, %v104
    %v107 = vmul.f32 %v105, %v105
    %v108 = vmul.f32 %v106, %v43
    %v109 = vmul.f32 %v107, %v44
    %v110 = vadd.f32 %v81, %v108
    %v111 = vadd.f32 %v82, %v109
    %112 = vrot.lane.b32.xlu0 %v38, 1
    %v113 = vpop.permute.xlu0 %112
    %114 = vrot.lane.b32.xlu0 %v50, 1
    %v115 = vpop.permute.xlu0 %114
    %116 = vrot.lane.b32.xlu0 %v39, 1
    %v117 = vpop.permute.xlu0 %116
    %118 = vrot.lane.b32.xlu0 %v51, 1
    %v119 = vpop.permute.xlu0 %118
    %vm120 = vcmp.lt.s32.totalorder %v63, 1
    %v121 = vsel %vm120, %v117, %v119
    %v122 = vsel %vm120, %v115, %v117
    %v123 = vsel %vm120, %v113, %v115
    %v124 = vsel %vm120, %v119, %v113
    %v129 = vcombine.low %v124, %v123
    %v130 = vcombine.low %v122, %v121
    %v133 = vsub.f32 %v38, %v129
    %v134 = vsub.f32 %v39, %v130
    %v135 = vmul.f32 %v133, %v133
    %v136 = vmul.f32 %v134, %v134
    %v137 = vmul.f32 %v135, %v46
    %v138 = vmul.f32 %v136, %v47
    %v139 = vadd.f32 %v110, %v137
    %v140 = vadd.f32 %v111, %v138
    %v143 = vcombine.high %v139, %v139
    %v144 = vcombine.high %v140, %v140
    %vm147 = vcmask 1043456
    %v148 = vsel %vm147, %v139, 0.0
    %v149 = vsel %vm147, %v143, 0.0
    %v150 = vadd.f32 %v148, %v149
    %v151 = vsel %vm147, %v140, 0.0
    %v152 = vadd.f32 %v150, %v151
    %v153 = vsel %vm147, %v144, 0.0
    %v154 = vadd.f32 %v152, %v153
    %155 = vadd.xlane.f32.xlu0 %v154
    %v156 = vpop.xlane.xlu0 %155
    %v157 = vrot.slane %v156, 4
    %v158 = vadd.f32 %v156, %v157
    %v159 = vrot.slane %v158, 2
    %v160 = vadd.f32 %v158, %v159
    %v161 = vrot.slane %v160, 1
    %v162 = vadd.f32 %v160, %v161
    %s163 = vtos %v162
    %v164 = vstv %s163
    %165 = vst [vmem:[#allocation7] sm:$0x1] %v164
    // Predicated region
    $region18: #{tpu_custom_call.1} parent=1 // pred_check
      _
    $region19: #{tpu_custom_call.1} parent=1 // pred_check_branch
      %167 = sbr.rel (0) target = $region21
    $region20: #{tpu_custom_call.1} parent=1 // pred_region
      %s169 = ssub.s32 16, 16
      %170 = vsyncadd [#allocation4], %s169
      %s172 = sshll.u32 [#allocation7], 4
      %s173 = int_to_ptr.vmem [resolvable:$true] %s172
      %175 = dma.vmem_to_hbm [thread:$0]  %s173, 16, %s2, [#allocation4]
    $region21: #{tpu_custom_call.1} parent=1 // pred_fallthru
      _
    // Predicated region
    $region22: #{tpu_custom_call.1} parent=1 // pred_check
      _
    $region23: #{tpu_custom_call.1} parent=1 // pred_check_branch
      %177 = sbr.rel (0) target = $region25
    $region24: #{tpu_custom_call.1} parent=1 // pred_region
      %178 = dma.done [#allocation4], 16
    $region25: #{tpu_custom_call.1} parent=1 // pred_fallthru
      _
    %179 = vsyncpa [#allocation3], 1
    %180 = vsyncpa [#allocation6], 1
    %181 = vsyncpa [#allocation4], 1

</llo_original>
